<compile_context>
chip_gen: v6e
topology: v6e:2x2x1
jax: 0.10.0
libtpu: 0.0.40
codegen_flags: <defaults>
</compile_context>

<pallas_src>
import jax
import jax.numpy as jnp
from jax.experimental import pallas as pl
from jax.experimental.pallas import tpu as pltpu

OUT_W = 128  # lane-dense padded output width (policy[:n_actions] | value | zeros)


def _round_up(x, m):
    return (x + m - 1) // m * m


def a2c_kernel(x_ref, w1_ref, b1_ref, w2_ref, b2_ref, w3_ref, b3_ref, mask_ref,
               out_ref):
    x = x_ref[...]                                                    # (TB, S) bf16

    # fused actor|critic tower: bf16 inputs/weights, f32 accumulation + biases
    h = jnp.dot(x, w1_ref[...], preferred_element_type=jnp.float32) + b1_ref[...]
    h = jnp.maximum(h, 0.0).astype(jnp.bfloat16)                      # (TB, 64)
    h = jnp.dot(h, w2_ref[...], preferred_element_type=jnp.float32) + b2_ref[...]
    h = jnp.maximum(h, 0.0).astype(jnp.bfloat16)                      # (TB, 128)
    pre = jnp.dot(h, w3_ref[...], preferred_element_type=jnp.float32) + b3_ref[...]
    # pre: (TB, OUT_W) f32. cols [0, n_actions) = actor logits,
    # col n_actions = value, remaining pad cols are exactly 0.

    # softmax over the action columns only, using a resident (1, OUT_W) 0/1 mask.
    mask = mask_ref[...]                                              # (1, OUT_W) f32
    masked = pre + (mask - 1.0) * 1e30          # -1e30 in value/pad cols (broadcast)
    m = jnp.max(masked, axis=-1, keepdims=True)
    e = jnp.exp(masked - m)                     # value/pad cols -> exactly 0
    denom = jnp.sum(e, axis=-1, keepdims=True)
    probs = e * pl.reciprocal(denom)            # exact reciprocal (denom is (TB,1))

    # policy in the action columns, raw value / zero pads elsewhere.
    out_ref[...] = pre + mask * (probs - pre)


def fuse_params(p, n_actions, out_w=OUT_W):
    """Concatenate / block-diagonalize actor+critic weights once, outside the kernel.

    Weights are stored in bf16 (single-pass MXU); biases stay f32.
    """
    assert n_actions + 1 <= out_w
    w1 = jnp.concatenate([p["w1a"], p["w1c"]], axis=1)                # (S, 64)
    b1 = jnp.concatenate([p["b1a"], p["b1c"]], axis=1)                # (1, 64)

    w2 = jnp.zeros((64, 128), jnp.float32)
    w2 = w2.at[:32, :64].set(p["w2a"]).at[32:, 64:].set(p["w2c"])     # block-diag
    b2 = jnp.concatenate([p["b2a"], p["b2c"]], axis=1)                # (1, 128)

    w3 = jnp.zeros((128, out_w), jnp.float32)
    w3 = w3.at[:64, :n_actions].set(p["w3a"])
    w3 = w3.at[64:, n_actions:n_actions + 1].set(p["w3c"])
    b3 = jnp.zeros((1, out_w), jnp.float32)
    b3 = b3.at[:, :n_actions].set(p["b3a"])
    b3 = b3.at[:, n_actions:n_actions + 1].set(p["b3c"])

    mask = jnp.zeros((1, out_w), jnp.float32).at[:, :n_actions].set(1.0)

    return {
        "w1": w1.astype(jnp.bfloat16), "b1": b1,
        "w2": w2.astype(jnp.bfloat16), "b2": b2,
        "w3": w3.astype(jnp.bfloat16), "b3": b3,
        "mask": mask,
    }


def a2c_forward(x, fused, n_actions, *, block_batch=4096, out_w=OUT_W):
    """x: [B, state_size] f32. fused: output of fuse_params. Returns (policy, value)."""
    B, S = x.shape
    if n_actions + 1 > out_w:
        raise ValueError(f"n_actions={n_actions} does not fit the {out_w}-wide slab")

    # Batch tiling: multiples of 8 sublanes, capped at block_batch (actual ceiling is
    # the *scoped* VMEM limit we set below, not physical VMEM). Force >= 2 grid steps
    # so the "parallel" batch axis can shard across v7x's two TensorCores.
    B8 = _round_up(B, 8)
    n_tiles = max(2, pl.cdiv(B8, block_batch))
    TB = _round_up(pl.cdiv(B8, n_tiles), 8)
    B_pad = TB * n_tiles
    if B_pad != B:
        x = jnp.pad(x, ((0, B_pad - B), (0, 0)))
    x = x.astype(jnp.bfloat16)                  # halve x-tile HBM read / VMEM

    weight_bytes = ((S * 64 + 64 * 128 + 128 * out_w) * 2      # bf16 weights
                    + (64 + 128 + out_w) * 4 + out_w * 4)      # f32 biases + mask
    cost = pl.CostEstimate(
        flops=2 * B_pad * (S * 64 + 64 * 128 + 128 * out_w),
        transcendentals=B_pad * out_w,
        bytes_accessed=B_pad * S * 2 + B_pad * out_w * 4 + weight_bytes,
    )

    out = pl.pallas_call(
        a2c_kernel,
        out_shape=jax.ShapeDtypeStruct((B_pad, out_w), jnp.float32),
        grid=(n_tiles,),
        in_specs=[
            pl.BlockSpec((TB, S), lambda i: (i, 0)),                   # x tile, pipelined
            pl.BlockSpec(fused["w1"].shape, lambda i: (0, 0)),         # weights resident
            pl.BlockSpec(fused["b1"].shape, lambda i: (0, 0)),
            pl.BlockSpec(fused["w2"].shape, lambda i: (0, 0)),
            pl.BlockSpec(fused["b2"].shape, lambda i: (0, 0)),
            pl.BlockSpec(fused["w3"].shape, lambda i: (0, 0)),
            pl.BlockSpec(fused["b3"].shape, lambda i: (0, 0)),
            pl.BlockSpec(fused["mask"].shape, lambda i: (0, 0)),
        ],
        out_specs=pl.BlockSpec((TB, out_w), lambda i: (i, 0)),         # lane-dense slab
        compiler_params=pltpu.CompilerParams(
            dimension_semantics=("parallel",),
            vmem_limit_bytes=32 * 1024 * 1024),
        cost_estimate=cost,
    )(x, fused["w1"], fused["b1"], fused["w2"], fused["b2"],
      fused["w3"], fused["b3"], fused["mask"])

    policy = out[:B, :n_actions]
    value = out[:B, n_actions:n_actions + 1]
    return policy, value


def init_params(key, state_size, n_actions):
    """PyTorch-style uniform init; weights stored as [in, out] so kernel does x @ W + b."""
    def linear(key, fan_in, fan_out):
        kw, kb = jax.random.split(key)
        bound = 1.0 / jnp.sqrt(fan_in)
        w = jax.random.uniform(kw, (fan_in, fan_out), jnp.float32, -bound, bound)
        b = jax.random.uniform(kb, (1, fan_out), jnp.float32, -bound, bound)
        return w, b

    keys = jax.random.split(key, 6)
    p = {}
    p["w1a"], p["b1a"] = linear(keys[0], state_size, 32)
    p["w2a"], p["b2a"] = linear(keys[1], 32, 64)
    p["w3a"], p["b3a"] = linear(keys[2], 64, n_actions)
    p["w1c"], p["b1c"] = linear(keys[3], state_size, 32)
    p["w2c"], p["b2c"] = linear(keys[4], 32, 64)
    p["w3c"], p["b3c"] = linear(keys[5], 64, 1)
    return p


def a2c_reference(x, p):
    """Pure-JAX f32 reference (unfused) for correctness checking."""
    h = jax.nn.relu(x @ p["w1a"] + p["b1a"])
    h = jax.nn.relu(h @ p["w2a"] + p["b2a"])
    policy = jax.nn.softmax(h @ p["w3a"] + p["b3a"], axis=-1)
    v = jax.nn.relu(x @ p["w1c"] + p["b1c"])
    v = jax.nn.relu(v @ p["w2c"] + p["b2c"])
    value = v @ p["w3c"] + p["b3c"]
    return policy, value


if __name__ == "__main__":
    state_size = 16
    n_actions = 4
    batch = 8

    key = jax.random.PRNGKey(0)
    kx, kp = jax.random.split(key)
    x = jax.random.normal(kx, (batch, state_size), jnp.float32)
    params = init_params(kp, state_size, n_actions)
    fused = fuse_params(params, n_actions)

    policy, value = a2c_forward(x, fused, n_actions)
    jax.block_until_ready((policy, value))

    ref_policy, ref_value = a2c_reference(x, params)
    assert policy.shape == (batch, n_actions)
    assert value.shape == (batch, 1)
    # bf16 weights/activations (f32 accumulation) -> tolerances loosened vs f32 ref.
    assert jnp.allclose(policy, ref_policy, atol=2e-2, rtol=2e-2)
    assert jnp.allclose(value, ref_value, atol=2e-2, rtol=2e-2)
    # exact reciprocal -> probabilities sum to 1 within f32 rounding
    assert jnp.allclose(jnp.sum(policy, axis=-1), 1.0, atol=1e-3)

    print("KERNEL_OK")
</pallas_src>

<mosaic_0001>
module attributes {stable_mosaic.version = 11 : i64} {
  func.func @a2c_kernel(%arg0: i32, %arg1: memref<8x16xbf16, #tpu.memory_space<vmem>>, %arg2: memref<16x64xbf16, #tpu.memory_space<vmem>>, %arg3: memref<1x64xf32, #tpu.memory_space<vmem>>, %arg4: memref<64x128xbf16, #tpu.memory_space<vmem>>, %arg5: memref<1x128xf32, #tpu.memory_space<vmem>>, %arg6: memref<128x128xbf16, #tpu.memory_space<vmem>>, %arg7: memref<1x128xf32, #tpu.memory_space<vmem>>, %arg8: memref<1x128xf32, #tpu.memory_space<vmem>>, %arg9: memref<8x128xf32, #tpu.memory_space<vmem>>) attributes {dimension_semantics = [#tpu.dimension_semantics<parallel>], iteration_bounds = array<i64: 2>, scalar_prefetch = 0 : i64, scratch_operands = 0 : i64, tpu.core_type = #tpu.core_type<tc>, window_params = [{transform_indices = @transform_0, window_bounds = array<i64: 8, 16>}, {pipeline_mode = #tpu.pipeline_mode<synchronous>, transform_indices = @transform_1, window_bounds = array<i64: 16, 64>}, {pipeline_mode = #tpu.pipeline_mode<synchronous>, transform_indices = @transform_2, window_bounds = array<i64: 1, 64>}, {pipeline_mode = #tpu.pipeline_mode<synchronous>, transform_indices = @transform_3, window_bounds = array<i64: 64, 128>}, {pipeline_mode = #tpu.pipeline_mode<synchronous>, transform_indices = @transform_4, window_bounds = array<i64: 1, 128>}, {pipeline_mode = #tpu.pipeline_mode<synchronous>, transform_indices = @transform_5, window_bounds = array<i64: 128, 128>}, {pipeline_mode = #tpu.pipeline_mode<synchronous>, transform_indices = @transform_6, window_bounds = array<i64: 1, 128>}, {pipeline_mode = #tpu.pipeline_mode<synchronous>, transform_indices = @transform_7, window_bounds = array<i64: 1, 128>}, {transform_indices = @transform_8, window_bounds = array<i64: 8, 128>}]} {
    %c0 = arith.constant 0 : index
    %c0_0 = arith.constant 0 : index
    %0 = vector.load %arg1[%c0, %c0_0] : memref<8x16xbf16, #tpu.memory_space<vmem>>, vector<8x16xbf16>
    %c0_1 = arith.constant 0 : index
    %c0_2 = arith.constant 0 : index
    %1 = vector.load %arg2[%c0_1, %c0_2] : memref<16x64xbf16, #tpu.memory_space<vmem>>, vector<16x64xbf16>
    %cst = arith.constant dense<0.000000e+00> : vector<8x64xf32>
    %2 = tpu.matmul %0, %1, %cst {dimension_numbers = #tpu.dot_dimension_numbers<[1], [0], [0], [1], [0, 0, 1, 1], [], []>} : vector<8x16xbf16>, vector<16x64xbf16>, vector<8x64xf32> -> vector<8x64xf32>
    %c0_3 = arith.constant 0 : index
    %c0_4 = arith.constant 0 : index
    %3 = vector.load %arg3[%c0_3, %c0_4] : memref<1x64xf32, #tpu.memory_space<vmem>>, vector<1x64xf32>
    %4 = vector.broadcast %3 : vector<1x64xf32> to vector<8x64xf32>
    %5 = arith.addf %2, %4 : vector<8x64xf32>
    %cst_5 = arith.constant 0.000000e+00 : f32
    %6 = vector.broadcast %cst_5 : f32 to vector<8x64xf32>
    %7 = arith.maximumf %5, %6 : vector<8x64xf32>
    %8 = arith.truncf %7 : vector<8x64xf32> to vector<8x64xbf16>
    %c0_6 = arith.constant 0 : index
    %c0_7 = arith.constant 0 : index
    %9 = vector.load %arg4[%c0_6, %c0_7] : memref<64x128xbf16, #tpu.memory_space<vmem>>, vector<64x128xbf16>
    %cst_8 = arith.constant dense<0.000000e+00> : vector<8x128xf32>
    %10 = tpu.matmul %8, %9, %cst_8 {dimension_numbers = #tpu.dot_dimension_numbers<[1], [0], [0], [1], [0, 0, 1, 1], [], []>} : vector<8x64xbf16>, vector<64x128xbf16>, vector<8x128xf32> -> vector<8x128xf32>
    %c0_9 = arith.constant 0 : index
    %c0_10 = arith.constant 0 : index
    %11 = vector.load %arg5[%c0_9, %c0_10] : memref<1x128xf32, #tpu.memory_space<vmem>>, vector<1x128xf32>
    %12 = vector.broadcast %11 : vector<1x128xf32> to vector<8x128xf32>
    %13 = arith.addf %10, %12 : vector<8x128xf32>
    %cst_11 = arith.constant 0.000000e+00 : f32
    %14 = vector.broadcast %cst_11 : f32 to vector<8x128xf32>
    %15 = arith.maximumf %13, %14 : vector<8x128xf32>
    %16 = arith.truncf %15 : vector<8x128xf32> to vector<8x128xbf16>
    %c0_12 = arith.constant 0 : index
    %c0_13 = arith.constant 0 : index
    %17 = vector.load %arg6[%c0_12, %c0_13] : memref<128x128xbf16, #tpu.memory_space<vmem>>, vector<128x128xbf16>
    %cst_14 = arith.constant dense<0.000000e+00> : vector<8x128xf32>
    %18 = tpu.matmul %16, %17, %cst_14 {dimension_numbers = #tpu.dot_dimension_numbers<[1], [0], [0], [1], [0, 0, 1, 1], [], []>} : vector<8x128xbf16>, vector<128x128xbf16>, vector<8x128xf32> -> vector<8x128xf32>
    %c0_15 = arith.constant 0 : index
    %c0_16 = arith.constant 0 : index
    %19 = vector.load %arg7[%c0_15, %c0_16] : memref<1x128xf32, #tpu.memory_space<vmem>>, vector<1x128xf32>
    %20 = vector.broadcast %19 : vector<1x128xf32> to vector<8x128xf32>
    %21 = arith.addf %18, %20 : vector<8x128xf32>
    %c0_17 = arith.constant 0 : index
    %c0_18 = arith.constant 0 : index
    %22 = vector.load %arg8[%c0_17, %c0_18] : memref<1x128xf32, #tpu.memory_space<vmem>>, vector<1x128xf32>
    %cst_19 = arith.constant 1.000000e+00 : f32
    %23 = vector.broadcast %cst_19 : f32 to vector<1x128xf32>
    %24 = arith.subf %22, %23 : vector<1x128xf32>
    %cst_20 = arith.constant 1.000000e+30 : f32
    %25 = vector.broadcast %cst_20 : f32 to vector<1x128xf32>
    %26 = arith.mulf %24, %25 : vector<1x128xf32>
    %27 = vector.broadcast %26 : vector<1x128xf32> to vector<8x128xf32>
    %28 = arith.addf %21, %27 : vector<8x128xf32>
    %cst_21 = arith.constant dense<0xFF800000> : vector<8xf32>
    %29 = vector.multi_reduction <maximumf>, %28, %cst_21 [1] : vector<8x128xf32> to vector<8xf32>
    %30 = vector.shape_cast %29 : vector<8xf32> to vector<8x1xf32>
    %31 = vector.broadcast %30 : vector<8x1xf32> to vector<8x128xf32>
    %32 = arith.subf %28, %31 : vector<8x128xf32>
    %33 = math.exp %32 : vector<8x128xf32>
    %cst_22 = arith.constant dense<0.000000e+00> : vector<8xf32>
    %34 = vector.multi_reduction <add>, %33, %cst_22 [1] : vector<8x128xf32> to vector<8xf32>
    %35 = vector.shape_cast %34 : vector<8xf32> to vector<8x1xf32>
    %36 = tpu.reciprocal %35 : vector<8x1xf32> -> vector<8x1xf32>
    %37 = vector.broadcast %36 : vector<8x1xf32> to vector<8x128xf32>
    %38 = arith.mulf %33, %37 : vector<8x128xf32>
    %39 = arith.subf %38, %21 : vector<8x128xf32>
    %40 = vector.broadcast %22 : vector<1x128xf32> to vector<8x128xf32>
    %41 = arith.mulf %40, %39 : vector<8x128xf32>
    %42 = arith.addf %21, %41 : vector<8x128xf32>
    %c0_23 = arith.constant 0 : index
    %c0_24 = arith.constant 0 : index
    %43 = vector.load %arg9[%c0_23, %c0_24] : memref<8x128xf32, #tpu.memory_space<vmem>>, vector<8x128xf32>
    tpu.vector_store %arg9[%c0_23, %c0_24], %42 {strides = array<i32>} : memref<8x128xf32, #tpu.memory_space<vmem>>, vector<8x128xf32>,
    return
  }
  func.func @transform_0(%arg0: i32) -> (i32, i32) {
    %c0_i32 = arith.constant 0 : i32
    %c0_i32_0 = arith.constant 0 : i32
    return %arg0, %c0_i32 : i32, i32
  }
  func.func @transform_1(%arg0: i32) -> (i32, i32) {
    %c0_i32 = arith.constant 0 : i32
    %c0_i32_0 = arith.constant 0 : i32
    %c0_i32_1 = arith.constant 0 : i32
    return %c0_i32, %c0_i32_0 : i32, i32
  }
  func.func @transform_2(%arg0: i32) -> (i32, i32) {
    %c0_i32 = arith.constant 0 : i32
    %c0_i32_0 = arith.constant 0 : i32
    %c0_i32_1 = arith.constant 0 : i32
    return %c0_i32, %c0_i32_0 : i32, i32
  }
  func.func @transform_3(%arg0: i32) -> (i32, i32) {
    %c0_i32 = arith.constant 0 : i32
    %c0_i32_0 = arith.constant 0 : i32
    %c0_i32_1 = arith.constant 0 : i32
    return %c0_i32, %c0_i32_0 : i32, i32
  }
  func.func @transform_4(%arg0: i32) -> (i32, i32) {
    %c0_i32 = arith.constant 0 : i32
    %c0_i32_0 = arith.constant 0 : i32
    %c0_i32_1 = arith.constant 0 : i32
    return %c0_i32, %c0_i32_0 : i32, i32
  }
  func.func @transform_5(%arg0: i32) -> (i32, i32) {
    %c0_i32 = arith.constant 0 : i32
    %c0_i32_0 = arith.constant 0 : i32
    %c0_i32_1 = arith.constant 0 : i32
    return %c0_i32, %c0_i32_0 : i32, i32
  }
  func.func @transform_6(%arg0: i32) -> (i32, i32) {
    %c0_i32 = arith.constant 0 : i32
    %c0_i32_0 = arith.constant 0 : i32
    %c0_i32_1 = arith.constant 0 : i32
    return %c0_i32, %c0_i32_0 : i32, i32
  }
  func.func @transform_7(%arg0: i32) -> (i32, i32) {
    %c0_i32 = arith.constant 0 : i32
    %c0_i32_0 = arith.constant 0 : i32
    %c0_i32_1 = arith.constant 0 : i32
    return %c0_i32, %c0_i32_0 : i32, i32
  }
  func.func @transform_8(%arg0: i32) -> (i32, i32) {
    %c0_i32 = arith.constant 0 : i32
    %c0_i32_0 = arith.constant 0 : i32
    return %arg0, %c0_i32 : i32, i32
  }
}

</mosaic_0001>

<llo_original>
// kernel: tpu_custom_call.1
$region0: #{tpu_custom_call.1}
  #allocation0 [shape = 'u32[]', space=smem, size = 0x4, offset = 0x4, fixed_abs, tag = 'smem constant byte address 0x4 - core index']
  #allocation1 [shape = 'u32[144,128]{1,0:T(1,128)}', space=vmem, size = 0x12000, scoped, tag = 'internal scratch']
  %s0 = inlined_call_operand.hbm [shape: bf16[16,16], index: 0, kind: input, shape index: {}]
  %s1 = inlined_call_operand.hbm [shape: bf16[16,64], index: 1, kind: input, shape index: {}]
  %s2 = inlined_call_operand.vmem [shape: f32[1,64], index: 2, kind: input, shape index: {}]
  %s3 = inlined_call_operand.hbm [shape: bf16[64,128], index: 3, kind: input, shape index: {}]
  %s4 = inlined_call_operand.vmem [shape: f32[1,128], index: 4, kind: input, shape index: {}]
  %s5 = inlined_call_operand.hbm [shape: bf16[128,128], index: 5, kind: input, shape index: {}]
  %s6 = inlined_call_operand.vmem [shape: f32[1,128], index: 6, kind: input, shape index: {}]
  %s7 = inlined_call_operand.vmem [shape: f32[1,128], index: 7, kind: input, shape index: {}]
  %s8 = inlined_call_operand.hbm [shape: f32[16,128], index: 8, kind: output, shape index: {}]
  %s9 = sld [smem:[#allocation0]]
  $region81: #{tpu_custom_call.1} parent=0
    _
  %s11 = ssub.s32 1, %s9
  %s12 = scalar_select 0, %s11, %s9
  $region1: #{tpu_custom_call.1} parent=0
    #allocation2 [shape = 'u8[4096]{0}', space=vmem, size = 0x1000, scoped, tag = 'input window, operand 0']
    #allocation3 [shape = 's32[2]{0}', space=sflag, size = 0x8, scoped, tag = 'scoped memory for tpu_custom_call.1']
    #allocation4 [shape = 's32[2]{0}', space=sflag, size = 0x8, scoped, tag = 'scoped memory for tpu_custom_call.1']
    #allocation5 [shape = 'u8[4096]{0}', space=vmem, size = 0x1000, scoped, tag = 'input window, operand 1, single buffered']
    #allocation6 [shape = 's32[1]{0}', space=sflag, size = 0x4, scoped, tag = 'scoped memory for tpu_custom_call.1']
    #allocation7 [shape = 'u8[16384]{0}', space=vmem, size = 0x4000, scoped, tag = 'input window, operand 3, single buffered']
    #allocation8 [shape = 'u8[32768]{0}', space=vmem, size = 0x8000, scoped, tag = 'input window, operand 5, single buffered']
    #allocation9 [shape = 's32[1]{0}', space=sflag, size = 0x4, scoped, tag = 'scoped memory for tpu_custom_call.1']
    #allocation10 [shape = 'u8[8192]{0}', space=vmem, size = 0x2000, scoped, tag = 'output window, operand 0']
    %13 = vsyncpa [#allocation3], 0
    %s14 = scalar_lea.sflag [#allocation3], 1
    %15 = vsyncpa %s14, 0
    %16 = vsyncpa [#allocation6], 0
    %17 = vsyncpa [#allocation9], 0
    %18 = vsyncpa [#allocation4], 0
    %s19 = scalar_lea.sflag [#allocation4], 1
    %20 = vsyncpa %s19, 0
    loop: start=0, step=1, limit=4
    $region2: #{tpu_custom_call.1} parent=1 // loop_pre_header
      _
    $region3: #{tpu_custom_call.1} parent=1 // loop_header
      %s22 = sphi 0, %s26
      %p23 = scmp.ge.s32.totalorder %s22, 4
      %s32 = sphi 0, %s34
      %s35 = sphi 0, %s32
      %s36 = sphi 0, %s35
      %s52 = sphi 0, %s36
      %s56 = sphi 0, %s56
      %s58 = sphi 0, %s56
      %s59 = sphi 0, %s58
      %s73 = sphi 0, %s59
      %s77 = sphi 0, %s77
      %s79 = sphi 0, %s77
      %s80 = sphi 0, %s79
      %s94 = sphi 0, %s80
      %s98 = sphi 0, %s98
      %s100 = sphi 0, %s98
      %s101 = sphi 0, %s100
      %s115 = sphi 0, %s101
      %s119 = sphi 0, %s119
      %s121 = sphi 0, %s119
      %s122 = sphi 0, %s121
      %s136 = sphi 0, %s122
      %s140 = sphi 0, %s140
      %s142 = sphi 0, %s140
      %s143 = sphi 0, %s142
      %s157 = sphi 0, %s143
      %s161 = sphi 0, %s161
      %s163 = sphi 0, %s161
      %s164 = sphi 0, %s163
      %s178 = sphi 0, %s164
      %s182 = sphi 0, %s182
      %s184 = sphi 0, %s182
      %s185 = sphi 0, %s184
      %s199 = sphi 0, %s185
      %s205 = sphi 0, %s207
      %s208 = sphi 0, %s205
      %s209 = sphi 0, %s208
      %s225 = sphi 0, %s209
    $region4: #{tpu_custom_call.1} parent=1 // loop_header_branch
      %25 = sbr.rel (%p23) target = $region8
    $region5: #{tpu_custom_call.1} parent=1 // loop_body
      %s27 = ssub.s32 %s22, 1
      %s28 = ssub.s32 %s22, 2
      %s29 = sadd.s32 %s22, 1
      %s30 = ssub.s32 %s22, %s29
      %p31 = scmp.eq.s32.totalorder %s30, 0
      %s33 = sadd.s32 %s32, 1
      %s34 = scalar_select %p31, %s32, %s33
      %p37 = pneg %p31
      %p38 = scmp.eq.s32.totalorder %s22, 1
      %p39 = por %p37, %p38
      %p40 = scmp.ne.s32.totalorder %s32, %s35
      %p41 = scmp.eq.s32.totalorder %s22, 0
      %p42 = por %p40, %p41
      %p43 = scmp.ne.s32.totalorder %s32, %s35
      %p44 = scmp.eq.s32.totalorder %s27, 1
      %p45 = por %p43, %p44
      %p46 = scmp.ne.s32.totalorder %s35, %s36
      %p47 = scmp.eq.s32.totalorder %s27, 0
      %p48 = por %p46, %p47
      %p49 = scmp.ne.s32.totalorder %s35, %s36
      %p50 = scmp.eq.s32.totalorder %s28, 1
      %p51 = por %p49, %p50
      %p53 = scmp.ne.s32.totalorder %s36, %s52
      %p54 = scmp.eq.s32.totalorder %s28, 0
      %p55 = por %p53, %p54
      %s57 = sadd.s32 %s56, 1
      %p60 = scmp.eq.s32.totalorder %s22, 1
      %p61 = scmp.ne.s32.totalorder %s56, %s58
      %p62 = scmp.eq.s32.totalorder %s22, 0
      %p63 = por %p61, %p62
      %p64 = scmp.ne.s32.totalorder %s56, %s58
      %p65 = scmp.eq.s32.totalorder %s27, 1
      %p66 = por %p64, %p65
      %p67 = scmp.ne.s32.totalorder %s58, %s59
      %p68 = scmp.eq.s32.totalorder %s27, 0
      %p69 = por %p67, %p68
      %p70 = scmp.ne.s32.totalorder %s58, %s59
      %p71 = scmp.eq.s32.totalorder %s28, 1
      %p72 = por %p70, %p71
      %p74 = scmp.ne.s32.totalorder %s59, %s73
      %p75 = scmp.eq.s32.totalorder %s28, 0
      %p76 = por %p74, %p75
      %s78 = sadd.s32 %s77, 1
      %p81 = scmp.eq.s32.totalorder %s22, 1
      %p82 = scmp.ne.s32.totalorder %s77, %s79
      %p83 = scmp.eq.s32.totalorder %s22, 0
      %p84 = por %p82, %p83
      %p85 = scmp.ne.s32.totalorder %s77, %s79
      %p86 = scmp.eq.s32.totalorder %s27, 1
      %p87 = por %p85, %p86
      %p88 = scmp.ne.s32.totalorder %s79, %s80
      %p89 = scmp.eq.s32.totalorder %s27, 0
      %p90 = por %p88, %p89
      %p91 = scmp.ne.s32.totalorder %s79, %s80
      %p92 = scmp.eq.s32.totalorder %s28, 1
      %p93 = por %p91, %p92
      %p95 = scmp.ne.s32.totalorder %s80, %s94
      %p96 = scmp.eq.s32.totalorder %s28, 0
      %p97 = por %p95, %p96
      %s99 = sadd.s32 %s98, 1
      %p102 = scmp.eq.s32.totalorder %s22, 1
      %p103 = scmp.ne.s32.totalorder %s98, %s100
      %p104 = scmp.eq.s32.totalorder %s22, 0
      %p105 = por %p103, %p104
      %p106 = scmp.ne.s32.totalorder %s98, %s100
      %p107 = scmp.eq.s32.totalorder %s27, 1
      %p108 = por %p106, %p107
      %p109 = scmp.ne.s32.totalorder %s100, %s101
      %p110 = scmp.eq.s32.totalorder %s27, 0
      %p111 = por %p109, %p110
      %p112 = scmp.ne.s32.totalorder %s100, %s101
      %p113 = scmp.eq.s32.totalorder %s28, 1
      %p114 = por %p112, %p113
      %p116 = scmp.ne.s32.totalorder %s101, %s115
      %p117 = scmp.eq.s32.totalorder %s28, 0
      %p118 = por %p116, %p117
      %s120 = sadd.s32 %s119, 1
      %p123 = scmp.eq.s32.totalorder %s22, 1
      %p124 = scmp.ne.s32.totalorder %s119, %s121
      %p125 = scmp.eq.s32.totalorder %s22, 0
      %p126 = por %p124, %p125
      %p127 = scmp.ne.s32.totalorder %s119, %s121
      %p128 = scmp.eq.s32.totalorder %s27, 1
      %p129 = por %p127, %p128
      %p130 = scmp.ne.s32.totalorder %s121, %s122
      %p131 = scmp.eq.s32.totalorder %s27, 0
      %p132 = por %p130, %p131
      %p133 = scmp.ne.s32.totalorder %s121, %s122
      %p134 = scmp.eq.s32.totalorder %s28, 1
      %p135 = por %p133, %p134
      %p137 = scmp.ne.s32.totalorder %s122, %s136
      %p138 = scmp.eq.s32.totalorder %s28, 0
      %p139 = por %p137, %p138
      %s141 = sadd.s32 %s140, 1
      %p144 = scmp.eq.s32.totalorder %s22, 1
      %p145 = scmp.ne.s32.totalorder %s140, %s142
      %p146 = scmp.eq.s32.totalorder %s22, 0
      %p147 = por %p145, %p146
      %p148 = scmp.ne.s32.totalorder %s140, %s142
      %p149 = scmp.eq.s32.totalorder %s27, 1
      %p150 = por %p148, %p149
      %p151 = scmp.ne.s32.totalorder %s142, %s143
      %p152 = scmp.eq.s32.totalorder %s27, 0
      %p153 = por %p151, %p152
      %p154 = scmp.ne.s32.totalorder %s142, %s143
      %p155 = scmp.eq.s32.totalorder %s28, 1
      %p156 = por %p154, %p155
      %p158 = scmp.ne.s32.totalorder %s143, %s157
      %p159 = scmp.eq.s32.totalorder %s28, 0
      %p160 = por %p158, %p159
      %s162 = sadd.s32 %s161, 1
      %p165 = scmp.eq.s32.totalorder %s22, 1
      %p166 = scmp.ne.s32.totalorder %s161, %s163
      %p167 = scmp.eq.s32.totalorder %s22, 0
      %p168 = por %p166, %p167
      %p169 = scmp.ne.s32.totalorder %s161, %s163
      %p170 = scmp.eq.s32.totalorder %s27, 1
      %p171 = por %p169, %p170
      %p172 = scmp.ne.s32.totalorder %s163, %s164
      %p173 = scmp.eq.s32.totalorder %s27, 0
      %p174 = por %p172, %p173
      %p175 = scmp.ne.s32.totalorder %s163, %s164
      %p176 = scmp.eq.s32.totalorder %s28, 1
      %p177 = por %p175, %p176
      %p179 = scmp.ne.s32.totalorder %s164, %s178
      %p180 = scmp.eq.s32.totalorder %s28, 0
      %p181 = por %p179, %p180
      %s183 = sadd.s32 %s182, 1
      %p186 = scmp.eq.s32.totalorder %s22, 1
      %p187 = scmp.ne.s32.totalorder %s182, %s184
      %p188 = scmp.eq.s32.totalorder %s22, 0
      %p189 = por %p187, %p188
      %p190 = scmp.ne.s32.totalorder %s182, %s184
      %p191 = scmp.eq.s32.totalorder %s27, 1
      %p192 = por %p190, %p191
      %p193 = scmp.ne.s32.totalorder %s184, %s185
      %p194 = scmp.eq.s32.totalorder %s27, 0
      %p195 = por %p193, %p194
      %p196 = scmp.ne.s32.totalorder %s184, %s185
      %p197 = scmp.eq.s32.totalorder %s28, 1
      %p198 = por %p196, %p197
      %p200 = scmp.ne.s32.totalorder %s185, %s199
      %p201 = scmp.eq.s32.totalorder %s28, 0
      %p202 = por %p200, %p201
      %s203 = ssub.s32 %s22, %s29
      %p204 = scmp.eq.s32.totalorder %s203, 0
      %s206 = sadd.s32 %s205, 1
      %s207 = scalar_select %p204, %s205, %s206
      %p210 = pneg %p204
      %p211 = scmp.eq.s32.totalorder %s22, 1
      %p212 = por %p210, %p211
      %p213 = scmp.ne.s32.totalorder %s205, %s208
      %p214 = scmp.eq.s32.totalorder %s22, 0
      %p215 = por %p213, %p214
      %p216 = scmp.ne.s32.totalorder %s205, %s208
      %p217 = scmp.eq.s32.totalorder %s27, 1
      %p218 = por %p216, %p217
      %p219 = scmp.ne.s32.totalorder %s208, %s209
      %p220 = scmp.eq.s32.totalorder %s27, 0
      %p221 = por %p219, %p220
      %p222 = scmp.ne.s32.totalorder %s208, %s209
      %p223 = scmp.eq.s32.totalorder %s28, 1
      %p224 = por %p222, %p223
      %p226 = scmp.ne.s32.totalorder %s209, %s225
      %p227 = scmp.eq.s32.totalorder %s28, 0
      %p228 = por %p226, %p227
      %p229 = scmp.le.s32.totalorder 1, %s22
      %p230 = scmp.lt.s32.totalorder %s22, 3
      %p231 = pnand %p229, %p230
      %p232 = pneg %p231
      // Predicated region
      $region9: #{tpu_custom_call.1} parent=5 // pred_check
        _
      $region10: #{tpu_custom_call.1} parent=5 // pred_check_branch
        %234 = sbr.rel (%p231) target = $region12
      $region11: #{tpu_custom_call.1} parent=5 // pred_region
        %s235 = ssub.s32 %s22, 1
        // Predicated region
        $region13: #{tpu_custom_call.1} parent=11 // pred_check
          %p236 = pneg %p69
        $region14: #{tpu_custom_call.1} parent=11 // pred_check_branch
          %238 = sbr.rel (%p236) target = $region16
        $region15: #{tpu_custom_call.1} parent=11 // pred_region
          %s240 = ssub.s32 128, 128
          %241 = vsyncadd [#allocation6], %s240
          %s242 = sshll.u32 [#allocation5], 4
          %s243 = int_to_ptr.vmem [resolvable:$true] %s242
          %248 = dma.hbm_to_vmem [thread:$0]  %s1, 128, %s243, [#allocation6], 64, 64, 4
        $region16: #{tpu_custom_call.1} parent=11 // pred_fallthru
          _
        // Predicated region
        $region17: #{tpu_custom_call.1} parent=11 // pred_check
          %p249 = pneg %p90
        $region18: #{tpu_custom_call.1} parent=11 // pred_check_branch
          %251 = sbr.rel (%p249) target = $region20
        $region19: #{tpu_custom_call.1} parent=11 // pred_region
          _
        $region20: #{tpu_custom_call.1} parent=11 // pred_fallthru
          _
        // Predicated region
        $region21: #{tpu_custom_call.1} parent=11 // pred_check
          %p252 = pneg %p111
        $region22: #{tpu_custom_call.1} parent=11 // pred_check_branch
          %254 = sbr.rel (%p252) target = $region24
        $region23: #{tpu_custom_call.1} parent=11 // pred_region
          %s256 = ssub.s32 512, 512
          %257 = vsyncadd [#allocation6], %s256
          %s258 = sshll.u32 [#allocation7], 4
          %s259 = int_to_ptr.vmem [resolvable:$true] %s258
          %264 = dma.hbm_to_vmem [thread:$0]  %s3, 512, %s259, [#allocation6], 64, 64, 4
        $region24: #{tpu_custom_call.1} parent=11 // pred_fallthru
          _
        // Predicated region
        $region25: #{tpu_custom_call.1} parent=11 // pred_check
          %p265 = pneg %p132
        $region26: #{tpu_custom_call.1} parent=11 // pred_check_branch
          %267 = sbr.rel (%p265) target = $region28
        $region27: #{tpu_custom_call.1} parent=11 // pred_region
          _
        $region28: #{tpu_custom_call.1} parent=11 // pred_fallthru
          _
        // Predicated region
        $region29: #{tpu_custom_call.1} parent=11 // pred_check
          %p268 = pneg %p153
        $region30: #{tpu_custom_call.1} parent=11 // pred_check_branch
          %270 = sbr.rel (%p268) target = $region32
        $region31: #{tpu_custom_call.1} parent=11 // pred_region
          %s272 = ssub.s32 1024, 1024
          %273 = vsyncadd [#allocation9], %s272
          %s274 = sshll.u32 [#allocation8], 4
          %s275 = int_to_ptr.vmem [resolvable:$true] %s274
          %280 = dma.hbm_to_vmem [thread:$0]  %s5, 1024, %s275, [#allocation9], 64, 64, 4
        $region32: #{tpu_custom_call.1} parent=11 // pred_fallthru
          _
        // Predicated region
        $region33: #{tpu_custom_call.1} parent=11 // pred_check
          %p281 = pneg %p174
        $region34: #{tpu_custom_call.1} parent=11 // pred_check_branch
          %283 = sbr.rel (%p281) target = $region36
        $region35: #{tpu_custom_call.1} parent=11 // pred_region
          _
        $region36: #{tpu_custom_call.1} parent=11 // pred_fallthru
          _
        // Predicated region
        $region37: #{tpu_custom_call.1} parent=11 // pred_check
          %p284 = pneg %p195
        $region38: #{tpu_custom_call.1} parent=11 // pred_check_branch
          %286 = sbr.rel (%p284) target = $region40
        $region39: #{tpu_custom_call.1} parent=11 // pred_region
          _
        $region40: #{tpu_custom_call.1} parent=11 // pred_fallthru
          _
      $region12: #{tpu_custom_call.1} parent=5 // pred_fallthru
        _
      %p287 = scmp.lt.s32.totalorder %s22, 2
      // Predicated region
      $region41: #{tpu_custom_call.1} parent=5 // pred_check
        %p288 = pneg %p287
      $region42: #{tpu_custom_call.1} parent=5 // pred_check_branch
        %290 = sbr.rel (%p288) target = $region44
      $region43: #{tpu_custom_call.1} parent=5 // pred_region
        // Predicated region
        $region45: #{tpu_custom_call.1} parent=43 // pred_check
          %p291 = pneg %p42
        $region46: #{tpu_custom_call.1} parent=43 // pred_check_branch
          %293 = sbr.rel (%p291) target = $region48
        $region47: #{tpu_custom_call.1} parent=43 // pred_region
          %s294 = sand.u32 %s32, 1
          %s295 = scalar_lea.sflag [#allocation3], %s294
          %s296 = sand.u32 %s32, 1
          %s297 = smul.addr %s296, 4
          %s298 = scalar_lea.vmem [#allocation2], %s297
          %s300 = ssub.s32 64, 64
          %301 = vsyncadd %s295, %s300
          %s302 = smul.addr %s22, 64
          %s303 = scalar_lea.hbm %s0, %s302
          %s305 = sshll.u32 %s298, 4
          %s306 = int_to_ptr.vmem [resolvable:$true] %s305
          %308 = dma.hbm_to_vmem [thread:$0]  %s303, 64, %s306, %s295
        $region48: #{tpu_custom_call.1} parent=43 // pred_fallthru
          _
      $region44: #{tpu_custom_call.1} parent=5 // pred_fallthru
        _
      %p309 = scmp.le.s32.totalorder 1, %s22
      %p310 = scmp.lt.s32.totalorder %s22, 3
      %p311 = pnand %p309, %p310
      %p312 = pneg %p311
      // Predicated region
      $region49: #{tpu_custom_call.1} parent=5 // pred_check
        _
      $region50: #{tpu_custom_call.1} parent=5 // pred_check_branch
        %314 = sbr.rel (%p311) target = $region52
      $region51: #{tpu_custom_call.1} parent=5 // pred_region
        %s315 = ssub.s32 %s22, 1
        %s316 = sand.u32 %s35, 1
        %s317 = scalar_lea.sflag [#allocation3], %s316
        %s318 = sand.u32 %s35, 1
        %s319 = smul.addr %s318, 4
        %s320 = scalar_lea.vmem [#allocation2], %s319
        // Predicated region
        $region53: #{tpu_custom_call.1} parent=51 // pred_check
          %p321 = pneg %p48
        $region54: #{tpu_custom_call.1} parent=51 // pred_check_branch
          %323 = sbr.rel (%p321) target = $region56
        $region55: #{tpu_custom_call.1} parent=51 // pred_region
          %324 = dma.done %s317, 64
        $region56: #{tpu_custom_call.1} parent=51 // pred_fallthru
          _
        // Predicated region
        $region57: #{tpu_custom_call.1} parent=51 // pred_check
          %p325 = pneg %p69
        $region58: #{tpu_custom_call.1} parent=51 // pred_check_branch
          %327 = sbr.rel (%p325) target = $region60
        $region59: #{tpu_custom_call.1} parent=51 // pred_region
          %328 = dma.done [#allocation6], 128
        $region60: #{tpu_custom_call.1} parent=51 // pred_fallthru
          _
        // Predicated region
        $region61: #{tpu_custom_call.1} parent=51 // pred_check
          %p329 = pneg %p111
        $region62: #{tpu_custom_call.1} parent=51 // pred_check_branch
          %331 = sbr.rel (%p329) target = $region64
        $region63: #{tpu_custom_call.1} parent=51 // pred_region
          %332 = dma.done [#allocation6], 512
        $region64: #{tpu_custom_call.1} parent=51 // pred_fallthru
          _
        // Predicated region
        $region65: #{tpu_custom_call.1} parent=51 // pred_check
          %p333 = pneg %p153
        $region66: #{tpu_custom_call.1} parent=51 // pred_check_branch
          %335 = sbr.rel (%p333) target = $region68
        $region67: #{tpu_custom_call.1} parent=51 // pred_region
          %336 = dma.done [#allocation9], 1024
        $region68: #{tpu_custom_call.1} parent=51 // pred_fallthru
          _
        %s337 = sand.u32 %s35, 1
        %s338 = scalar_lea.sflag [#allocation3], %s337
        %s339 = sand.u32 %s35, 1
        %s340 = smul.addr %s339, 4
        %s341 = scalar_lea.vmem [#allocation2], %s340
        %p342 = pneg %p48
        %p343 = pneg %p45
        %p344 = pneg %p69
        %p345 = pneg %p66
        %p346 = pneg %p90
        %p347 = pneg %p87
        %p348 = pneg %p111
        %p349 = pneg %p108
        %p350 = pneg %p132
        %p351 = pneg %p129
        %p352 = pneg %p153
        %p353 = pneg %p150
        %p354 = pneg %p174
        %p355 = pneg %p171
        %p356 = pneg %p195
        %p357 = pneg %p192
        %p358 = pneg %p221
        %p359 = pneg %p218
        %s360 = sand.u32 %s208, 1
        %s361 = scalar_lea.sflag [#allocation4], %s360
        %s362 = sand.u32 %s208, 1
        %s363 = smul.addr %s362, 8
        %s364 = scalar_lea.vmem [#allocation10], %s363
        %v366 = vld [vmem:[%s320] sm:$0xf]
        %v367 = vld [vmem:[#allocation5] sm:$0xf]
        %v368 = vld [vmem:[#allocation5 + $0x4] sm:$0xf]
        %v369 = vld [vmem:[%s2] sm:$0x1]
        %v371 = vlaneseq
        %v372 = vshrl.u32 %v371, 7
        %v373 = vsub.s32 0, %v372
        %v374 = vrot.slane %v369, %v373
        %v378 = vunpack.c.l.b16 %v367
        %v379 = vunpack.c.l.b16 %v368
        %v380 = vpack.c.b16 %v379, %v378
        %vm382 = vcmask 130048
        %v384 = vsel %vm382, %v366, 0
        %386 = vmatprep.subr.bf16.mxu0 0
        %387 = vmatpush1.bf16.msra.mxu0 0
        %388 = vmatprep.subr.bf16.mxu0 0
        %389 = vmatpush1.bf16.msra.mxu0 0
        %390 = vmatprep.subr.bf16.mxu0 0
        %391 = vmatpush1.bf16.msra.mxu0 0
        %392 = vmatprep.subr.bf16.mxu0 0
        %393 = vmatpush1.bf16.msra.mxu0 0
        %394 = vmatprep.subr.bf16.mxu0 0
        %395 = vmatpush1.bf16.msra.mxu0 0
        %396 = vmatprep.subr.bf16.mxu0 0
        %397 = vmatpush1.bf16.msra.mxu0 0
        %398 = vmatprep.subr.bf16.mxu0 0
        %399 = vmatpush1.bf16.msra.mxu0 0
        %400 = vmatprep.subr.bf16.mxu0 0
        %401 = vmatpush1.bf16.msra.mxu0 %v380
        %402 = vmatprep.subr.bf16.mxu0 0
        %403 = vmatpush2.bf16.msra.mxu0 0
        %404 = vmatprep.subr.bf16.mxu0 0
        %405 = vmatpush2.bf16.msra.mxu0 0
        %406 = vmatprep.subr.bf16.mxu0 0
        %407 = vmatpush2.bf16.msra.mxu0 0
        %408 = vmatprep.subr.bf16.mxu0 0
        %409 = vmatpush2.bf16.msra.mxu0 0
        %410 = vmatprep.subr.bf16.mxu0 0
        %411 = vmatpush2.bf16.msra.mxu0 0
        %412 = vmatprep.subr.bf16.mxu0 0
        %413 = vmatpush2.bf16.msra.mxu0 0
        %414 = vmatprep.subr.bf16.mxu0 0
        %415 = vmatpush2.bf16.msra.mxu0 0
        %416 = vmatprep.subr.bf16.mxu0 0
        %417 = vmatpush2.bf16.msra.mxu0 0
        %418 = vmatprep.mubr.bf16.mxu0 0
        %419 = vmatmul.mubr.bf16.gmra.mxu0 %v384
        %v420 = vpop.f32.mrf.mxu0
        %v421 = vadd.f32 %v374, %v420
        %v422 = vpop.f32.mrf.mxu0
        %v423 = vpop.f32.mrf.mxu0
        %v424 = vpop.f32.mrf.mxu0
        %425 = vdwg.mxu0
        %v426 = vmax.f32 %v421, 0.0
        %v427 = vpack.c.bf16 %v426, %v426
        %v428 = vld [vmem:[#allocation7] sm:$0xf]
        %v429 = vld [vmem:[#allocation7 + $0x4] sm:$0xf]
        %v430 = vld [vmem:[#allocation7 + $0x8] sm:$0xf]
        %v431 = vld [vmem:[#allocation7 + $0xc] sm:$0xf]
        %v432 = vld [vmem:[#allocation7 + $0x10] sm:$0xf]
        %v433 = vld [vmem:[#allocation7 + $0x14] sm:$0xf]
        %v434 = vld [vmem:[#allocation7 + $0x18] sm:$0xf]
        %v435 = vld [vmem:[#allocation7 + $0x1c] sm:$0xf]
        %v436 = vld [vmem:[%s4] sm:$0x1]
        %v438 = vlaneseq
        %v439 = vshrl.u32 %v438, 7
        %v440 = vsub.s32 0, %v439
        %v441 = vrot.slane %v436, %v440
        %v451 = vunpack.c.l.b16 %v428
        %v452 = vunpack.c.l.b16 %v429
        %v453 = vunpack.c.l.b16 %v430
        %v454 = vunpack.c.l.b16 %v431
        %v455 = vunpack.c.l.b16 %v432
        %v456 = vunpack.c.l.b16 %v433
        %v457 = vunpack.c.l.b16 %v434
        %v458 = vunpack.c.l.b16 %v435
        %v459 = vpack.c.b16 %v452, %v451
        %v460 = vpack.c.b16 %v454, %v453
        %v461 = vpack.c.b16 %v456, %v455
        %v462 = vpack.c.b16 %v458, %v457
        %vm467 = vcmask 523264
        %v469 = vsel %vm467, %v427, 0
        %471 = vmatprep.subr.bf16.mxu0 0
        %472 = vmatpush1.bf16.msra.mxu0 0
        %473 = vmatprep.subr.bf16.mxu0 0
        %474 = vmatpush1.bf16.msra.mxu0 0
        %475 = vmatprep.subr.bf16.mxu0 0
        %476 = vmatpush1.bf16.msra.mxu0 0
        %477 = vmatprep.subr.bf16.mxu0 0
        %478 = vmatpush1.bf16.msra.mxu0 0
        %479 = vmatprep.subr.bf16.mxu0 0
        %480 = vmatpush1.bf16.msra.mxu0 %v462
        %481 = vmatprep.subr.bf16.mxu0 0
        %482 = vmatpush1.bf16.msra.mxu0 %v461
        %483 = vmatprep.subr.bf16.mxu0 0
        %484 = vmatpush1.bf16.msra.mxu0 %v460
        %485 = vmatprep.subr.bf16.mxu0 0
        %486 = vmatpush1.bf16.msra.mxu0 %v459
        %487 = vmatprep.subr.bf16.mxu0 0
        %488 = vmatpush2.bf16.msra.mxu0 0
        %489 = vmatprep.subr.bf16.mxu0 0
        %490 = vmatpush2.bf16.msra.mxu0 0
        %491 = vmatprep.subr.bf16.mxu0 0
        %492 = vmatpush2.bf16.msra.mxu0 0
        %493 = vmatprep.subr.bf16.mxu0 0
        %494 = vmatpush2.bf16.msra.mxu0 0
        %495 = vmatprep.subr.bf16.mxu0 0
        %496 = vmatpush2.bf16.msra.mxu0 0
        %497 = vmatprep.subr.bf16.mxu0 0
        %498 = vmatpush2.bf16.msra.mxu0 0
        %499 = vmatprep.subr.bf16.mxu0 0
        %500 = vmatpush2.bf16.msra.mxu0 0
        %501 = vmatprep.subr.bf16.mxu0 0
        %502 = vmatpush2.bf16.msra.mxu0 0
        %503 = vmatprep.mubr.bf16.mxu0 0
        %504 = vmatmul.mubr.bf16.gmra.mxu0 %v469
        %v505 = vpop.f32.mrf.mxu0
        %v506 = vadd.f32 %v441, %v505
        %v507 = vpop.f32.mrf.mxu0
        %v508 = vpop.f32.mrf.mxu0
        %v509 = vpop.f32.mrf.mxu0
        %510 = vdwg.mxu0
        %v511 = vmax.f32 %v506, 0.0
        %v512 = vpack.c.bf16 %v511, %v511
        %v513 = vld [vmem:[#allocation8] sm:$0xf]
        %v514 = vld [vmem:[#allocation8 + $0x4] sm:$0xf]
        %v515 = vld [vmem:[#allocation8 + $0x8] sm:$0xf]
        %v516 = vld [vmem:[#allocation8 + $0xc] sm:$0xf]
        %v517 = vld [vmem:[#allocation8 + $0x10] sm:$0xf]
        %v518 = vld [vmem:[#allocation8 + $0x14] sm:$0xf]
        %v519 = vld [vmem:[#allocation8 + $0x18] sm:$0xf]
        %v520 = vld [vmem:[#allocation8 + $0x1c] sm:$0xf]
        %v521 = vld [vmem:[#allocation8 + $0x20] sm:$0xf]
        %v522 = vld [vmem:[#allocation8 + $0x24] sm:$0xf]
        %v523 = vld [vmem:[#allocation8 + $0x28] sm:$0xf]
        %v524 = vld [vmem:[#allocation8 + $0x2c] sm:$0xf]
        %v525 = vld [vmem:[#allocation8 + $0x30] sm:$0xf]
        %v526 = vld [vmem:[#allocation8 + $0x34] sm:$0xf]
        %v527 = vld [vmem:[#allocation8 + $0x38] sm:$0xf]
        %v528 = vld [vmem:[#allocation8 + $0x3c] sm:$0xf]
        %v529 = vld [vmem:[%s6] sm:$0x1]
        %v531 = vlaneseq
        %v532 = vshrl.u32 %v531, 7
        %v533 = vsub.s32 0, %v532
        %v534 = vrot.slane %v529, %v533
        %v552 = vunpack.c.l.b16 %v513
        %v553 = vunpack.c.l.b16 %v514
        %v554 = vunpack.c.l.b16 %v515
        %v555 = vunpack.c.l.b16 %v516
        %v556 = vunpack.c.l.b16 %v517
        %v557 = vunpack.c.l.b16 %v518
        %v558 = vunpack.c.l.b16 %v519
        %v559 = vunpack.c.l.b16 %v520
        %v560 = vunpack.c.l.b16 %v521
        %v561 = vunpack.c.l.b16 %v522
        %v562 = vunpack.c.l.b16 %v523
        %v563 = vunpack.c.l.b16 %v524
        %v564 = vunpack.c.l.b16 %v525
        %v565 = vunpack.c.l.b16 %v526
        %v566 = vunpack.c.l.b16 %v527
        %v567 = vunpack.c.l.b16 %v528
        %v568 = vpack.c.b16 %v553, %v552
        %v569 = vpack.c.b16 %v555, %v554
        %v570 = vpack.c.b16 %v557, %v556
        %v571 = vpack.c.b16 %v559, %v558
        %v572 = vpack.c.b16 %v561, %v560
        %v573 = vpack.c.b16 %v563, %v562
        %v574 = vpack.c.b16 %v565, %v564
        %v575 = vpack.c.b16 %v567, %v566
        %584 = vmatprep.subr.bf16.mxu0 0
        %585 = vmatpush1.bf16.msra.mxu0 %v575
        %586 = vmatprep.subr.bf16.mxu0 0
        %587 = vmatpush1.bf16.msra.mxu0 %v574
        %588 = vmatprep.subr.bf16.mxu0 0
        %589 = vmatpush1.bf16.msra.mxu0 %v573
        %590 = vmatprep.subr.bf16.mxu0 0
        %591 = vmatpush1.bf16.msra.mxu0 %v572
        %592 = vmatprep.subr.bf16.mxu0 0
        %593 = vmatpush1.bf16.msra.mxu0 %v571
        %594 = vmatprep.subr.bf16.mxu0 0
        %595 = vmatpush1.bf16.msra.mxu0 %v570
        %596 = vmatprep.subr.bf16.mxu0 0
        %597 = vmatpush1.bf16.msra.mxu0 %v569
        %598 = vmatprep.subr.bf16.mxu0 0
        %599 = vmatpush1.bf16.msra.mxu0 %v568
        %600 = vmatprep.subr.bf16.mxu0 0
        %601 = vmatpush2.bf16.msra.mxu0 0
        %602 = vmatprep.subr.bf16.mxu0 0
        %603 = vmatpush2.bf16.msra.mxu0 0
        %604 = vmatprep.subr.bf16.mxu0 0
        %605 = vmatpush2.bf16.msra.mxu0 0
        %606 = vmatprep.subr.bf16.mxu0 0
        %607 = vmatpush2.bf16.msra.mxu0 0
        %608 = vmatprep.subr.bf16.mxu0 0
        %609 = vmatpush2.bf16.msra.mxu0 0
        %610 = vmatprep.subr.bf16.mxu0 0
        %611 = vmatpush2.bf16.msra.mxu0 0
        %612 = vmatprep.subr.bf16.mxu0 0
        %613 = vmatpush2.bf16.msra.mxu0 0
        %614 = vmatprep.subr.bf16.mxu0 0
        %615 = vmatpush2.bf16.msra.mxu0 0
        %616 = vmatprep.mubr.bf16.mxu0 0
        %617 = vmatmul.mubr.bf16.gmra.mxu0 %v512
        %v618 = vpop.f32.mrf.mxu0
        %v619 = vadd.f32 %v534, %v618
        %v620 = vpop.f32.mrf.mxu0
        %v621 = vpop.f32.mrf.mxu0
        %v622 = vpop.f32.mrf.mxu0
        %623 = vdwg.mxu0
        %v624 = vld [vmem:[%s7] sm:$0x1]
        %v625 = vsub.f32 %v624, 1.0
        %v626 = vmul.f32 %v625, 1e+30
        %v628 = vlaneseq
        %v629 = vshrl.u32 %v628, 7
        %v630 = vsub.s32 0, %v629
        %v631 = vrot.slane %v626, %v630
        %v633 = vadd.f32 %v619, %v631
        %634 = vmax.xlane.f32.xlu0 %v633
        %v635 = vpop.xlane.xlu0 %634
        %v636 = vsub.f32 %v633, %v635
        %v637 = vmul.f32 %v636, 1.442695
        %v638 = vpow.pop %v637
        %639 = vadd.xlane.f32.xlu0 %v638
        %v640 = vpop.xlane.xlu0 %639
        %v641 = vrcp.pop %v640
        %v642 = vmul.f32 %v638, %v641
        %v643 = vsub.f32 %v642, %v619
        %v645 = vlaneseq
        %v646 = vshrl.u32 %v645, 7
        %v647 = vsub.s32 0, %v646
        %v648 = vrot.slane %v624, %v647
        %v650 = vmul.f32 %v648, %v643
        %v651 = vadd.f32 %v619, %v650
        %652 = vst [vmem:[%s364] sm:$0xff] %v651
        %s653 = sand.u32 %s208, 1
        %s654 = scalar_lea.sflag [#allocation4], %s653
        %s655 = sand.u32 %s208, 1
        %s656 = smul.addr %s655, 8
        %s657 = scalar_lea.vmem [#allocation10], %s656
        // Predicated region
        $region69: #{tpu_custom_call.1} parent=51 // pred_check
          %p658 = pneg %p218
        $region70: #{tpu_custom_call.1} parent=51 // pred_check_branch
          %660 = sbr.rel (%p658) target = $region72
        $region71: #{tpu_custom_call.1} parent=51 // pred_region
          %s662 = ssub.s32 128, 128
          %663 = vsyncadd %s654, %s662
          %s664 = smul.addr %s27, 128
          %s665 = scalar_lea.hbm %s8, %s664
          %s667 = sshll.u32 %s657, 4
          %s668 = int_to_ptr.vmem [resolvable:$true] %s667
          %670 = dma.vmem_to_hbm [thread:$0]  %s668, 128, %s665, %s654
        $region72: #{tpu_custom_call.1} parent=51 // pred_fallthru
          _
      $region52: #{tpu_custom_call.1} parent=5 // pred_fallthru
        _
      %p671 = scmp.le.s32.totalorder 2, %s22
      // Predicated region
      $region73: #{tpu_custom_call.1} parent=5 // pred_check
        %p672 = pneg %p671
      $region74: #{tpu_custom_call.1} parent=5 // pred_check_branch
        %674 = sbr.rel (%p672) target = $region76
      $region75: #{tpu_custom_call.1} parent=5 // pred_region
        %s675 = ssub.s32 %s22, 2
        // Predicated region
        $region77: #{tpu_custom_call.1} parent=75 // pred_check
          %p676 = pneg %p224
        $region78: #{tpu_custom_call.1} parent=75 // pred_check_branch
          %678 = sbr.rel (%p676) target = $region80
        $region79: #{tpu_custom_call.1} parent=75 // pred_region
          %s679 = sand.u32 %s209, 1
          %s680 = scalar_lea.sflag [#allocation4], %s679
          %s681 = sand.u32 %s209, 1
          %s682 = smul.addr %s681, 8
          %s683 = scalar_lea.vmem [#allocation10], %s682
          %684 = dma.done %s680, 128
        $region80: #{tpu_custom_call.1} parent=75 // pred_fallthru
          _
      $region76: #{tpu_custom_call.1} parent=5 // pred_fallthru
        _
    $region6: #{tpu_custom_call.1} parent=1 // loop_footer
      %s26 = sadd.s32 1, %s22
    $region7: #{tpu_custom_call.1} parent=1 // loop_footer_branch
      %21 = sbr.rel target = $region3
    $region8: #{tpu_custom_call.1} parent=1 // loop_exit
      _
    %685 = vsyncpa [#allocation3], 1
    %s686 = scalar_lea.sflag [#allocation3], 1
    %687 = vsyncpa %s686, 1
    %688 = vsyncpa [#allocation6], 1
    %689 = vsyncpa [#allocation9], 1
    %690 = vsyncpa [#allocation4], 1
    %s691 = scalar_lea.sflag [#allocation4], 1
    %692 = vsyncpa %s691, 1

</llo_original>
